<compile_context>
chip_gen: v5e
topology: v5e:2x2
jax: 0.10.0
libtpu: 0.0.40
codegen_flags: <defaults>
</compile_context>

<pallas_src>
import numpy as np

import jax
import jax.numpy as jnp
from jax.experimental import pallas as pl
from jax.experimental.pallas import tpu as pltpu

WINDOW_SIZE = 11
SIGMA = 1.5
C1 = 0.01 ** 2
C2 = 0.03 ** 2


def _gaussian_1d(window_size, sigma):
    # Deterministic "parameter" init: identical to gaussian() in the module.
    x = np.arange(window_size, dtype=np.float64)
    g = np.exp(-((x - window_size // 2) ** 2) / (2.0 * sigma ** 2))
    return g / g.sum()                      # float64; cast at use sites


def _band_matrix(n, g):
    """(n, n) band matrix B with B[i, j] = g[j - i + R] for |i - j| <= R.

    Right-multiplying (rows, n) @ B == 1-D 'same' cross-correlation along the
    last axis with zero padding; left-multiplying B @ (n, cols) == the same
    along the first axis.  Out-of-range taps are simply absent, which matches
    F.conv2d's zero-padding behaviour exactly (g is symmetric, so conv == xcorr).
    """
    r = len(g) // 2
    b = np.zeros((n, n), dtype=np.float64)
    for i in range(n):
        for j in range(max(0, i - r), min(n, i + r + 1)):
            b[i, j] = g[j - i + r]
    return b.astype(np.float32)


def _choose_planes_per_block(n_planes, h, max_rows=512):
    """Planes per grid step: fatten the grid while keeping blocks aligned."""
    if n_planes * h <= max_rows:
        return n_planes                      # whole tensor in one grid step
    cands = [d for d in range(1, n_planes + 1)
             if n_planes % d == 0 and d * h <= max_rows
             and d % 8 == 0 and (d * h) % 8 == 0]
    if cands:
        return max(cands)
    # TODO(synk): row-tile H with an 11-row halo instead of one huge block.
    return n_planes


def _make_ssim_kernel(P, H, W):
    PH = P * H

    def kernel(x1_ref, x2_ref, aw_ref, av_ref, sel_ref, o_ref):
        x1 = x1_ref[...]                      # (PH, W): P planes row-stacked
        x2 = x2_ref[...]
        aw = aw_ref[...]                      # (W, W)   horizontal band matrix
        av = av_ref[...]                      # (PH, PH) block-diag vertical band

        # Stack the five conv operands along M -> ONE horizontal MXU matmul.
        s = jnp.concatenate([x1, x2, x1 * x1, x2 * x2, x1 * x2], axis=0)  # (5PH, W)
        yh = jnp.dot(s, aw, preferred_element_type=jnp.float32)          # (5PH, W)

        # Vertical pass: one (PH,PH)@(PH,W) MXU matmul per operand.  The
        # block-diagonal band matrix applies the 1-D gaussian independently to
        # each plane, with the zero 'same' padding folded into the band.
        mu1 = jnp.dot(av, yh[0 * PH:1 * PH, :], preferred_element_type=jnp.float32)
        mu2 = jnp.dot(av, yh[1 * PH:2 * PH, :], preferred_element_type=jnp.float32)
        e11 = jnp.dot(av, yh[2 * PH:3 * PH, :], preferred_element_type=jnp.float32)
        e22 = jnp.dot(av, yh[3 * PH:4 * PH, :], preferred_element_type=jnp.float32)
        e12 = jnp.dot(av, yh[4 * PH:5 * PH, :], preferred_element_type=jnp.float32)

        mu1_sq = mu1 * mu1
        mu2_sq = mu2 * mu2
        mu1_mu2 = mu1 * mu2
        sigma1_sq = e11 - mu1_sq
        sigma2_sq = e22 - mu2_sq
        sigma12 = e12 - mu1_mu2

        num = (2.0 * mu1_mu2 + C1) * (2.0 * sigma12 + C2)
        den = (mu1_sq + mu2_sq + C1) * (sigma1_sq + sigma2_sq + C2)
        # Exact divide (approx reciprocal is a tolerance risk here).
        ssim_map = num / den                                   # (PH, W)

        # Per-plane reduction: tiny selector matmul + lane reduce.
        per_plane = jnp.dot(sel_ref[...], ssim_map,
                            preferred_element_type=jnp.float32)   # (P, W)
        o_ref[...] = jnp.sum(per_plane, axis=1, keepdims=True)    # (P, 1)

    return kernel


def ssim_pallas(img1, img2, window_size=WINDOW_SIZE, size_average=True):
    """Equivalent of SSIM().forward(img1, img2) for NCHW float32 inputs."""
    B, C, H, W = img1.shape
    n_planes = B * C
    P = _choose_planes_per_block(n_planes, H)
    PH = P * H
    num_blocks = n_planes // P

    g = _gaussian_1d(window_size, SIGMA)
    aw = jnp.asarray(_band_matrix(W, g))                                          # (W, W)
    av = jnp.asarray(np.kron(np.eye(P), _band_matrix(H, g)).astype(np.float32))   # (PH, PH)
    sel = jnp.asarray(np.kron(np.eye(P), np.ones((1, H))).astype(np.float32))     # (P, PH)

    # Free (contiguous) reshape: planes row-stacked, no padding copies in HBM.
    x1 = img1.astype(jnp.float32).reshape(n_planes * H, W)
    x2 = img2.astype(jnp.float32).reshape(n_planes * H, W)

    kernel = _make_ssim_kernel(P, H, W)

    # Scoped-VMEM budget sized to the tile (inputs x 2 buffers + constants +
    # stacked operand / conv outputs / elementwise temporaries), with slack.
    est = 4 * (2 * 2 * PH * W
               + 2 * (W * W + PH * PH + P * PH)
               + 6 * 5 * PH * W
               + 12 * PH * W
               + 2 * P)
    vmem_limit = int(min(48 * 2 ** 20, max(16 * 2 ** 20, 4 * est)))

    sums = pl.pallas_call(
        kernel,
        out_shape=jax.ShapeDtypeStruct((n_planes, 1), jnp.float32),
        grid=(num_blocks,),
        in_specs=[
            pl.BlockSpec((PH, W), lambda i: (i, 0)),   # x1 planes
            pl.BlockSpec((PH, W), lambda i: (i, 0)),   # x2 planes
            pl.BlockSpec((W, W), lambda i: (0, 0)),    # horizontal band matrix
            pl.BlockSpec((PH, PH), lambda i: (0, 0)),  # vertical band matrix
            pl.BlockSpec((P, PH), lambda i: (0, 0)),   # per-plane selector
        ],
        out_specs=pl.BlockSpec((P, 1), lambda i: (i, 0)),
        compiler_params=pltpu.CompilerParams(
            dimension_semantics=("parallel",),
            vmem_limit_bytes=vmem_limit),
    )(x1, x2, aw, av, sel)

    sums = sums[:, 0]                                   # per-plane ssim sums
    if size_average:
        return jnp.sum(sums) / (n_planes * H * W)
    else:
        # ssim_map.mean(1).mean(1).mean(1): per-sample mean over C, H, W
        return jnp.sum(sums.reshape(B, C), axis=1) / (C * H * W)


# ----------------------------------------------------------------------------
# Independent host-side float64 reference (direct shifted-slice depthwise conv;
# no band matrices, no JAX conv — fully independent of the kernel's math path).
# ----------------------------------------------------------------------------
def _conv_same_np(x, win2d):
    k = win2d.shape[0]
    r = k // 2
    B, C, H, W = x.shape
    xp = np.pad(x, ((0, 0), (0, 0), (r, r), (r, r)))
    out = np.zeros_like(x)
    for di in range(k):
        for dj in range(k):
            out += win2d[di, dj] * xp[:, :, di:di + H, dj:dj + W]
    return out


def _ssim_reference_np(img1, img2, window_size=WINDOW_SIZE, size_average=True):
    g = _gaussian_1d(window_size, SIGMA)
    win2d = np.outer(g, g)
    x1 = np.asarray(img1, dtype=np.float64)
    x2 = np.asarray(img2, dtype=np.float64)
    mu1 = _conv_same_np(x1, win2d)
    mu2 = _conv_same_np(x2, win2d)
    mu1_sq, mu2_sq, mu1_mu2 = mu1 * mu1, mu2 * mu2, mu1 * mu2
    sigma1_sq = _conv_same_np(x1 * x1, win2d) - mu1_sq
    sigma2_sq = _conv_same_np(x2 * x2, win2d) - mu2_sq
    sigma12 = _conv_same_np(x1 * x2, win2d) - mu1_mu2
    ssim_map = ((2 * mu1_mu2 + C1) * (2 * sigma12 + C2) /
                ((mu1_sq + mu2_sq + C1) * (sigma1_sq + sigma2_sq + C2)))
    if size_average:
        return ssim_map.mean()
    return ssim_map.mean(axis=(1, 2, 3))


if __name__ == "__main__":
    key = jax.random.PRNGKey(0)
    k1, k2 = jax.random.split(key)
    shape = (2, 4, 16, 16)  # N, C, H, W
    img1 = jax.random.uniform(k1, shape, dtype=jnp.float32)
    img2 = jax.random.uniform(k2, shape, dtype=jnp.float32)

    # size_average=True (scalar) and False (per-sample vector) exercise the
    # same kernel; only the host-side reduction differs.
    out_avg = jax.block_until_ready(ssim_pallas(img1, img2, size_average=True))
    out_per = jax.block_until_ready(ssim_pallas(img1, img2, size_average=False))

    ref_avg = _ssim_reference_np(np.asarray(img1), np.asarray(img2), size_average=True)
    ref_per = _ssim_reference_np(np.asarray(img1), np.asarray(img2), size_average=False)

    # Tolerance leaves room for MXU f32 rounding vs. the float64 host reference.
    ok_avg = np.allclose(np.asarray(out_avg), ref_avg, rtol=2e-3, atol=2e-3)
    ok_per = np.allclose(np.asarray(out_per), ref_per, rtol=2e-3, atol=2e-3)
    if not (ok_avg and ok_per):
        raise AssertionError(
            f"mismatch: pallas_avg={out_avg} ref_avg={ref_avg} "
            f"pallas_per={out_per} ref_per={ref_per}")

    print("KERNEL_OK")
</pallas_src>

<mosaic_0001>
module attributes {stable_mosaic.version = 11 : i64} {
  func.func @kernel(%arg0: i32, %arg1: memref<128x16xf32, #tpu.memory_space<vmem>>, %arg2: memref<128x16xf32, #tpu.memory_space<vmem>>, %arg3: memref<16x16xf32, #tpu.memory_space<vmem>>, %arg4: memref<128x128xf32, #tpu.memory_space<vmem>>, %arg5: memref<8x128xf32, #tpu.memory_space<vmem>>, %arg6: memref<8x1xf32, #tpu.memory_space<vmem>>) attributes {dimension_semantics = [#tpu.dimension_semantics<parallel>], iteration_bounds = array<i64: 1>, scalar_prefetch = 0 : i64, scratch_operands = 0 : i64, tpu.core_type = #tpu.core_type<tc>, window_params = [{transform_indices = @transform_0, window_bounds = array<i64: 128, 16>}, {transform_indices = @transform_1, window_bounds = array<i64: 128, 16>}, {pipeline_mode = #tpu.pipeline_mode<synchronous>, transform_indices = @transform_2, window_bounds = array<i64: 16, 16>}, {pipeline_mode = #tpu.pipeline_mode<synchronous>, transform_indices = @transform_3, window_bounds = array<i64: 128, 128>}, {pipeline_mode = #tpu.pipeline_mode<synchronous>, transform_indices = @transform_4, window_bounds = array<i64: 8, 128>}, {transform_indices = @transform_5, window_bounds = array<i64: 8, 1>}]} {
    %c0 = arith.constant 0 : index
    %c0_0 = arith.constant 0 : index
    %0 = vector.load %arg1[%c0, %c0_0] : memref<128x16xf32, #tpu.memory_space<vmem>>, vector<128x16xf32>
    %c0_1 = arith.constant 0 : index
    %c0_2 = arith.constant 0 : index
    %1 = vector.load %arg2[%c0_1, %c0_2] : memref<128x16xf32, #tpu.memory_space<vmem>>, vector<128x16xf32>
    %c0_3 = arith.constant 0 : index
    %c0_4 = arith.constant 0 : index
    %2 = vector.load %arg3[%c0_3, %c0_4] : memref<16x16xf32, #tpu.memory_space<vmem>>, vector<16x16xf32>
    %c0_5 = arith.constant 0 : index
    %c0_6 = arith.constant 0 : index
    %3 = vector.load %arg4[%c0_5, %c0_6] : memref<128x128xf32, #tpu.memory_space<vmem>>, vector<128x128xf32>
    %4 = arith.mulf %0, %0 : vector<128x16xf32>
    %5 = arith.mulf %1, %1 : vector<128x16xf32>
    %6 = arith.mulf %0, %1 : vector<128x16xf32>
    %7 = tpu.concatenate %0, %1, %4, %5, %6 in 0 : vector<128x16xf32>, vector<128x16xf32>, vector<128x16xf32>, vector<128x16xf32>, vector<128x16xf32> -> vector<640x16xf32>
    %cst = arith.constant dense<0.000000e+00> : vector<640x16xf32>
    %8 = tpu.matmul %7, %2, %cst {dimension_numbers = #tpu.dot_dimension_numbers<[1], [0], [0], [1], [0, 0, 1, 1], [], []>} : vector<640x16xf32>, vector<16x16xf32>, vector<640x16xf32> -> vector<640x16xf32>
    %9 = vector.extract_strided_slice %8 {offsets = [0, 0], sizes = [128, 16], strides = [1, 1]} : vector<640x16xf32> to vector<128x16xf32>
    %cst_7 = arith.constant dense<0.000000e+00> : vector<128x16xf32>
    %10 = tpu.matmul %3, %9, %cst_7 {dimension_numbers = #tpu.dot_dimension_numbers<[1], [0], [0], [1], [0, 0, 1, 1], [], []>} : vector<128x128xf32>, vector<128x16xf32>, vector<128x16xf32> -> vector<128x16xf32>
    %11 = vector.extract_strided_slice %8 {offsets = [128, 0], sizes = [128, 16], strides = [1, 1]} : vector<640x16xf32> to vector<128x16xf32>
    %cst_8 = arith.constant dense<0.000000e+00> : vector<128x16xf32>
    %12 = tpu.matmul %3, %11, %cst_8 {dimension_numbers = #tpu.dot_dimension_numbers<[1], [0], [0], [1], [0, 0, 1, 1], [], []>} : vector<128x128xf32>, vector<128x16xf32>, vector<128x16xf32> -> vector<128x16xf32>
    %13 = vector.extract_strided_slice %8 {offsets = [256, 0], sizes = [128, 16], strides = [1, 1]} : vector<640x16xf32> to vector<128x16xf32>
    %cst_9 = arith.constant dense<0.000000e+00> : vector<128x16xf32>
    %14 = tpu.matmul %3, %13, %cst_9 {dimension_numbers = #tpu.dot_dimension_numbers<[1], [0], [0], [1], [0, 0, 1, 1], [], []>} : vector<128x128xf32>, vector<128x16xf32>, vector<128x16xf32> -> vector<128x16xf32>
    %15 = vector.extract_strided_slice %8 {offsets = [384, 0], sizes = [128, 16], strides = [1, 1]} : vector<640x16xf32> to vector<128x16xf32>
    %cst_10 = arith.constant dense<0.000000e+00> : vector<128x16xf32>
    %16 = tpu.matmul %3, %15, %cst_10 {dimension_numbers = #tpu.dot_dimension_numbers<[1], [0], [0], [1], [0, 0, 1, 1], [], []>} : vector<128x128xf32>, vector<128x16xf32>, vector<128x16xf32> -> vector<128x16xf32>
    %17 = vector.extract_strided_slice %8 {offsets = [512, 0], sizes = [128, 16], strides = [1, 1]} : vector<640x16xf32> to vector<128x16xf32>
    %cst_11 = arith.constant dense<0.000000e+00> : vector<128x16xf32>
    %18 = tpu.matmul %3, %17, %cst_11 {dimension_numbers = #tpu.dot_dimension_numbers<[1], [0], [0], [1], [0, 0, 1, 1], [], []>} : vector<128x128xf32>, vector<128x16xf32>, vector<128x16xf32> -> vector<128x16xf32>
    %19 = arith.mulf %10, %10 : vector<128x16xf32>
    %20 = arith.mulf %12, %12 : vector<128x16xf32>
    %21 = arith.mulf %10, %12 : vector<128x16xf32>
    %22 = arith.subf %14, %19 : vector<128x16xf32>
    %23 = arith.subf %16, %20 : vector<128x16xf32>
    %24 = arith.subf %18, %21 : vector<128x16xf32>
    %cst_12 = arith.constant 2.000000e+00 : f32
    %25 = vector.broadcast %cst_12 : f32 to vector<128x16xf32>
    %26 = arith.mulf %25, %21 : vector<128x16xf32>
    %cst_13 = arith.constant 9.99999974E-5 : f32
    %27 = vector.broadcast %cst_13 : f32 to vector<128x16xf32>
    %28 = arith.addf %26, %27 : vector<128x16xf32>
    %cst_14 = arith.constant 2.000000e+00 : f32
    %29 = vector.broadcast %cst_14 : f32 to vector<128x16xf32>
    %30 = arith.mulf %29, %24 : vector<128x16xf32>
    %cst_15 = arith.constant 8.99999984E-4 : f32
    %31 = vector.broadcast %cst_15 : f32 to vector<128x16xf32>
    %32 = arith.addf %30, %31 : vector<128x16xf32>
    %33 = arith.mulf %28, %32 : vector<128x16xf32>
    %34 = arith.addf %19, %20 : vector<128x16xf32>
    %cst_16 = arith.constant 9.99999974E-5 : f32
    %35 = vector.broadcast %cst_16 : f32 to vector<128x16xf32>
    %36 = arith.addf %34, %35 : vector<128x16xf32>
    %37 = arith.addf %22, %23 : vector<128x16xf32>
    %cst_17 = arith.constant 8.99999984E-4 : f32
    %38 = vector.broadcast %cst_17 : f32 to vector<128x16xf32>
    %39 = arith.addf %37, %38 : vector<128x16xf32>
    %40 = arith.mulf %36, %39 : vector<128x16xf32>
    %41 = arith.divf %33, %40 : vector<128x16xf32>
    %c0_18 = arith.constant 0 : index
    %c0_19 = arith.constant 0 : index
    %42 = vector.load %arg5[%c0_18, %c0_19] : memref<8x128xf32, #tpu.memory_space<vmem>>, vector<8x128xf32>
    %cst_20 = arith.constant dense<0.000000e+00> : vector<8x16xf32>
    %43 = tpu.matmul %42, %41, %cst_20 {dimension_numbers = #tpu.dot_dimension_numbers<[1], [0], [0], [1], [0, 0, 1, 1], [], []>} : vector<8x128xf32>, vector<128x16xf32>, vector<8x16xf32> -> vector<8x16xf32>
    %cst_21 = arith.constant dense<0.000000e+00> : vector<8xf32>
    %44 = vector.multi_reduction <add>, %43, %cst_21 [1] : vector<8x16xf32> to vector<8xf32>
    %45 = vector.shape_cast %44 : vector<8xf32> to vector<8x1xf32>
    %c0_22 = arith.constant 0 : index
    %c0_23 = arith.constant 0 : index
    %46 = vector.load %arg6[%c0_22, %c0_23] : memref<8x1xf32, #tpu.memory_space<vmem>>, vector<8x1xf32>
    tpu.vector_store %arg6[%c0_22, %c0_23], %45 {strides = array<i32>} : memref<8x1xf32, #tpu.memory_space<vmem>>, vector<8x1xf32>,
    return
  }
  func.func @transform_0(%arg0: i32) -> (i32, i32) {
    %c0_i32 = arith.constant 0 : i32
    %c0_i32_0 = arith.constant 0 : i32
    return %arg0, %c0_i32 : i32, i32
  }
  func.func @transform_1(%arg0: i32) -> (i32, i32) {
    %c0_i32 = arith.constant 0 : i32
    %c0_i32_0 = arith.constant 0 : i32
    return %arg0, %c0_i32 : i32, i32
  }
  func.func @transform_2(%arg0: i32) -> (i32, i32) {
    %c0_i32 = arith.constant 0 : i32
    %c0_i32_0 = arith.constant 0 : i32
    %c0_i32_1 = arith.constant 0 : i32
    return %c0_i32, %c0_i32_0 : i32, i32
  }
  func.func @transform_3(%arg0: i32) -> (i32, i32) {
    %c0_i32 = arith.constant 0 : i32
    %c0_i32_0 = arith.constant 0 : i32
    %c0_i32_1 = arith.constant 0 : i32
    return %c0_i32, %c0_i32_0 : i32, i32
  }
  func.func @transform_4(%arg0: i32) -> (i32, i32) {
    %c0_i32 = arith.constant 0 : i32
    %c0_i32_0 = arith.constant 0 : i32
    %c0_i32_1 = arith.constant 0 : i32
    return %c0_i32, %c0_i32_0 : i32, i32
  }
  func.func @transform_5(%arg0: i32) -> (i32, i32) {
    %c0_i32 = arith.constant 0 : i32
    %c0_i32_0 = arith.constant 0 : i32
    return %arg0, %c0_i32 : i32, i32
  }
}

</mosaic_0001>

<llo_original>
// kernel: tpu_custom_call.1
$region0: #{tpu_custom_call.1}
  #allocation0 [shape = 'u32[]', space=smem, size = 0x4, offset = 0x4, fixed_abs, tag = 'smem constant byte address 0x4 - core index']
  #allocation1 [shape = 'u32[72,128]{1,0:T(1,128)}', space=vmem, size = 0x9000, scoped, tag = 'internal scratch']
  %s0 = inlined_call_operand.vmem [shape: f32[128,16], index: 0, kind: input, shape index: {}]
  %s1 = inlined_call_operand.vmem [shape: f32[128,16], index: 1, kind: input, shape index: {}]
  %s2 = inlined_call_operand.vmem [shape: f32[16,16], index: 2, kind: input, shape index: {}]
  %s3 = inlined_call_operand.vmem [shape: f32[128,128], index: 3, kind: input, shape index: {}]
  %s4 = inlined_call_operand.vmem [shape: f32[8,128], index: 4, kind: input, shape index: {}]
  %s5 = inlined_call_operand.vmem [shape: f32[8,1], index: 5, kind: output, shape index: {}]
  %s6 = sld [smem:[#allocation0]]
  $region30: #{tpu_custom_call.1} parent=0
    _
  %s8 = ssub.s32 1, %s6
  %s9 = scalar_select 0, %s8, %s6
  // Predicated region
  $region2: #{tpu_custom_call.1} parent=0 // pred_check
    _
  $region3: #{tpu_custom_call.1} parent=0 // pred_check_branch
    %11 = sbr.rel (0) target = $region5
  $region4: #{tpu_custom_call.1} parent=0 // pred_region
    _
  $region5: #{tpu_custom_call.1} parent=0 // pred_fallthru
    _
  // Predicated region
  $region6: #{tpu_custom_call.1} parent=0 // pred_check
    _
  $region7: #{tpu_custom_call.1} parent=0 // pred_check_branch
    %13 = sbr.rel (0) target = $region9
  $region8: #{tpu_custom_call.1} parent=0 // pred_region
    _
  $region9: #{tpu_custom_call.1} parent=0 // pred_fallthru
    _
  // Predicated region
  $region10: #{tpu_custom_call.1} parent=0 // pred_check
    _
  $region11: #{tpu_custom_call.1} parent=0 // pred_check_branch
    %15 = sbr.rel (0) target = $region13
  $region12: #{tpu_custom_call.1} parent=0 // pred_region
    _
  $region13: #{tpu_custom_call.1} parent=0 // pred_fallthru
    _
  // Predicated region
  $region14: #{tpu_custom_call.1} parent=0 // pred_check
    _
  $region15: #{tpu_custom_call.1} parent=0 // pred_check_branch
    %17 = sbr.rel (0) target = $region17
  $region16: #{tpu_custom_call.1} parent=0 // pred_region
    _
  $region17: #{tpu_custom_call.1} parent=0 // pred_fallthru
    _
  // Predicated region
  $region18: #{tpu_custom_call.1} parent=0 // pred_check
    _
  $region19: #{tpu_custom_call.1} parent=0 // pred_check_branch
    %19 = sbr.rel (0) target = $region21
  $region20: #{tpu_custom_call.1} parent=0 // pred_region
    _
  $region21: #{tpu_custom_call.1} parent=0 // pred_fallthru
    _
  %v20 = vld [vmem:[%s0] sm:$0xff]
  %v21 = vld [vmem:[%s0 + $0x8] sm:$0xff]
  %v22 = vld [vmem:[%s0 + $0x10] sm:$0xff]
  %v23 = vld [vmem:[%s0 + $0x18] sm:$0xff]
  %v24 = vld [vmem:[%s0 + $0x20] sm:$0xff]
  %v25 = vld [vmem:[%s0 + $0x28] sm:$0xff]
  %v26 = vld [vmem:[%s0 + $0x30] sm:$0xff]
  %v27 = vld [vmem:[%s0 + $0x38] sm:$0xff]
  %v28 = vld [vmem:[%s0 + $0x40] sm:$0xff]
  %v29 = vld [vmem:[%s0 + $0x48] sm:$0xff]
  %v30 = vld [vmem:[%s0 + $0x50] sm:$0xff]
  %v31 = vld [vmem:[%s0 + $0x58] sm:$0xff]
  %v32 = vld [vmem:[%s0 + $0x60] sm:$0xff]
  %v33 = vld [vmem:[%s0 + $0x68] sm:$0xff]
  %v34 = vld [vmem:[%s0 + $0x70] sm:$0xff]
  %v35 = vld [vmem:[%s0 + $0x78] sm:$0xff]
  %v36 = vld [vmem:[%s1] sm:$0xff]
  %v37 = vld [vmem:[%s1 + $0x8] sm:$0xff]
  %v38 = vld [vmem:[%s1 + $0x10] sm:$0xff]
  %v39 = vld [vmem:[%s1 + $0x18] sm:$0xff]
  %v40 = vld [vmem:[%s1 + $0x20] sm:$0xff]
  %v41 = vld [vmem:[%s1 + $0x28] sm:$0xff]
  %v42 = vld [vmem:[%s1 + $0x30] sm:$0xff]
  %v43 = vld [vmem:[%s1 + $0x38] sm:$0xff]
  %v44 = vld [vmem:[%s1 + $0x40] sm:$0xff]
  %v45 = vld [vmem:[%s1 + $0x48] sm:$0xff]
  %v46 = vld [vmem:[%s1 + $0x50] sm:$0xff]
  %v47 = vld [vmem:[%s1 + $0x58] sm:$0xff]
  %v48 = vld [vmem:[%s1 + $0x60] sm:$0xff]
  %v49 = vld [vmem:[%s1 + $0x68] sm:$0xff]
  %v50 = vld [vmem:[%s1 + $0x70] sm:$0xff]
  %v51 = vld [vmem:[%s1 + $0x78] sm:$0xff]
  %v52 = vld [vmem:[%s2] sm:$0xff]
  %v53 = vld [vmem:[%s2 + $0x8] sm:$0xff]
  %v54 = vld [vmem:[%s3] sm:$0xff]
  %v55 = vld [vmem:[%s3 + $0x8] sm:$0xff]
  %v56 = vld [vmem:[%s3 + $0x10] sm:$0xff]
  %v57 = vld [vmem:[%s3 + $0x18] sm:$0xff]
  %v58 = vld [vmem:[%s3 + $0x20] sm:$0xff]
  %v59 = vld [vmem:[%s3 + $0x28] sm:$0xff]
  %v60 = vld [vmem:[%s3 + $0x30] sm:$0xff]
  %v61 = vld [vmem:[%s3 + $0x38] sm:$0xff]
  %v62 = vld [vmem:[%s3 + $0x40] sm:$0xff]
  %v63 = vld [vmem:[%s3 + $0x48] sm:$0xff]
  %v64 = vld [vmem:[%s3 + $0x50] sm:$0xff]
  %v65 = vld [vmem:[%s3 + $0x58] sm:$0xff]
  %v66 = vld [vmem:[%s3 + $0x60] sm:$0xff]
  %v67 = vld [vmem:[%s3 + $0x68] sm:$0xff]
  %v68 = vld [vmem:[%s3 + $0x70] sm:$0xff]
  %v69 = vld [vmem:[%s3 + $0x78] sm:$0xff]
  %v70 = vmul.f32 %v20, %v20
  %v71 = vmul.f32 %v21, %v21
  %v72 = vmul.f32 %v22, %v22
  %v73 = vmul.f32 %v23, %v23
  %v74 = vmul.f32 %v24, %v24
  %v75 = vmul.f32 %v25, %v25
  %v76 = vmul.f32 %v26, %v26
  %v77 = vmul.f32 %v27, %v27
  %v78 = vmul.f32 %v28, %v28
  %v79 = vmul.f32 %v29, %v29
  %v80 = vmul.f32 %v30, %v30
  %v81 = vmul.f32 %v31, %v31
  %v82 = vmul.f32 %v32, %v32
  %v83 = vmul.f32 %v33, %v33
  %v84 = vmul.f32 %v34, %v34
  %v85 = vmul.f32 %v35, %v35
  %v86 = vmul.f32 %v36, %v36
  %v87 = vmul.f32 %v37, %v37
  %v88 = vmul.f32 %v38, %v38
  %v89 = vmul.f32 %v39, %v39
  %v90 = vmul.f32 %v40, %v40
  %v91 = vmul.f32 %v41, %v41
  %v92 = vmul.f32 %v42, %v42
  %v93 = vmul.f32 %v43, %v43
  %v94 = vmul.f32 %v44, %v44
  %v95 = vmul.f32 %v45, %v45
  %v96 = vmul.f32 %v46, %v46
  %v97 = vmul.f32 %v47, %v47
  %v98 = vmul.f32 %v48, %v48
  %v99 = vmul.f32 %v49, %v49
  %v100 = vmul.f32 %v50, %v50
  %v101 = vmul.f32 %v51, %v51
  %v102 = vmul.f32 %v20, %v36
  %v103 = vmul.f32 %v21, %v37
  %v104 = vmul.f32 %v22, %v38
  %v105 = vmul.f32 %v23, %v39
  %v106 = vmul.f32 %v24, %v40
  %v107 = vmul.f32 %v25, %v41
  %v108 = vmul.f32 %v26, %v42
  %v109 = vmul.f32 %v27, %v43
  %v110 = vmul.f32 %v28, %v44
  %v111 = vmul.f32 %v29, %v45
  %v112 = vmul.f32 %v30, %v46
  %v113 = vmul.f32 %v31, %v47
  %v114 = vmul.f32 %v32, %v48
  %v115 = vmul.f32 %v33, %v49
  %v116 = vmul.f32 %v34, %v50
  %v117 = vmul.f32 %v35, %v51
  %vm118 = vcmask 130048
  %v120 = vsel %vm118, %v20, 0
  %v123 = vsel %vm118, %v21, 0
  %v126 = vsel %vm118, %v22, 0
  %v129 = vsel %vm118, %v23, 0
  %v132 = vsel %vm118, %v24, 0
  %v135 = vsel %vm118, %v25, 0
  %v138 = vsel %vm118, %v26, 0
  %v141 = vsel %vm118, %v27, 0
  %v144 = vsel %vm118, %v28, 0
  %v147 = vsel %vm118, %v29, 0
  %v150 = vsel %vm118, %v30, 0
  %v153 = vsel %vm118, %v31, 0
  %v156 = vsel %vm118, %v32, 0
  %v159 = vsel %vm118, %v33, 0
  %v162 = vsel %vm118, %v34, 0
  %v165 = vsel %vm118, %v35, 0
  %v168 = vsel %vm118, %v36, 0
  %v171 = vsel %vm118, %v37, 0
  %v174 = vsel %vm118, %v38, 0
  %v177 = vsel %vm118, %v39, 0
  %v180 = vsel %vm118, %v40, 0
  %v183 = vsel %vm118, %v41, 0
  %v186 = vsel %vm118, %v42, 0
  %v189 = vsel %vm118, %v43, 0
  %v192 = vsel %vm118, %v44, 0
  %v195 = vsel %vm118, %v45, 0
  %v198 = vsel %vm118, %v46, 0
  %v201 = vsel %vm118, %v47, 0
  %v204 = vsel %vm118, %v48, 0
  %v207 = vsel %vm118, %v49, 0
  %v210 = vsel %vm118, %v50, 0
  %v213 = vsel %vm118, %v51, 0
  %v216 = vsel %vm118, %v70, 0
  %v219 = vsel %vm118, %v71, 0
  %v222 = vsel %vm118, %v72, 0
  %v225 = vsel %vm118, %v73, 0
  %v228 = vsel %vm118, %v74, 0
  %v231 = vsel %vm118, %v75, 0
  %v234 = vsel %vm118, %v76, 0
  %v237 = vsel %vm118, %v77, 0
  %v240 = vsel %vm118, %v78, 0
  %v243 = vsel %vm118, %v79, 0
  %v246 = vsel %vm118, %v80, 0
  %v249 = vsel %vm118, %v81, 0
  %v252 = vsel %vm118, %v82, 0
  %v255 = vsel %vm118, %v83, 0
  %v258 = vsel %vm118, %v84, 0
  %v261 = vsel %vm118, %v85, 0
  %v264 = vsel %vm118, %v86, 0
  %v267 = vsel %vm118, %v87, 0
  %v270 = vsel %vm118, %v88, 0
  %v273 = vsel %vm118, %v89, 0
  %v276 = vsel %vm118, %v90, 0
  %v279 = vsel %vm118, %v91, 0
  %v282 = vsel %vm118, %v92, 0
  %v285 = vsel %vm118, %v93, 0
  %v288 = vsel %vm118, %v94, 0
  %v291 = vsel %vm118, %v95, 0
  %v294 = vsel %vm118, %v96, 0
  %v297 = vsel %vm118, %v97, 0
  %v300 = vsel %vm118, %v98, 0
  %v303 = vsel %vm118, %v99, 0
  %v306 = vsel %vm118, %v100, 0
  %v309 = vsel %vm118, %v101, 0
  %v312 = vsel %vm118, %v102, 0
  %v315 = vsel %vm118, %v103, 0
  %v318 = vsel %vm118, %v104, 0
  %v321 = vsel %vm118, %v105, 0
  %v324 = vsel %vm118, %v106, 0
  %v327 = vsel %vm118, %v107, 0
  %v330 = vsel %vm118, %v108, 0
  %v333 = vsel %vm118, %v109, 0
  %v336 = vsel %vm118, %v110, 0
  %v339 = vsel %vm118, %v111, 0
  %v342 = vsel %vm118, %v112, 0
  %v345 = vsel %vm118, %v113, 0
  %v348 = vsel %vm118, %v114, 0
  %v351 = vsel %vm118, %v115, 0
  %v354 = vsel %vm118, %v116, 0
  %v357 = vsel %vm118, %v117, 0
  %359 = vmatpush.msra.mxu0 0.0
  %360 = vmatpush.msra.mxu0 0.0
  %361 = vmatpush.msra.mxu0 0.0
  %362 = vmatpush.msra.mxu0 0.0
  %363 = vmatpush.msra.mxu0 0.0
  %364 = vmatpush.msra.mxu0 0.0
  %365 = vmatpush.msra.mxu0 0.0
  %366 = vmatpush.msra.mxu0 0.0
  %367 = vmatpush.msra.mxu0 0.0
  %368 = vmatpush.msra.mxu0 0.0
  %369 = vmatpush.msra.mxu0 0.0
  %370 = vmatpush.msra.mxu0 0.0
  %371 = vmatpush.msra.mxu0 0.0
  %372 = vmatpush.msra.mxu0 0.0
  %373 = vmatpush.msra.mxu0 %v53
  %374 = vmatpush.msra.mxu0 %v52
  %375 = vmatmul.f32.gmra.mxu0 %v120
  %v376 = vpop.f32.mrf.mxu0
  %v377 = vadd.f32 0.0, %v376
  %378 = vmatmul.f32.gmra.mxu0 %v123
  %v379 = vpop.f32.mrf.mxu0
  %v380 = vadd.f32 0.0, %v379
  %381 = vmatmul.f32.gmra.mxu0 %v126
  %v382 = vpop.f32.mrf.mxu0
  %v383 = vadd.f32 0.0, %v382
  %384 = vmatmul.f32.gmra.mxu0 %v129
  %v385 = vpop.f32.mrf.mxu0
  %v386 = vadd.f32 0.0, %v385
  %387 = vmatmul.f32.gmra.mxu0 %v132
  %v388 = vpop.f32.mrf.mxu0
  %v389 = vadd.f32 0.0, %v388
  %390 = vmatmul.f32.gmra.mxu0 %v135
  %v391 = vpop.f32.mrf.mxu0
  %v392 = vadd.f32 0.0, %v391
  %393 = vmatmul.f32.gmra.mxu0 %v138
  %v394 = vpop.f32.mrf.mxu0
  %v395 = vadd.f32 0.0, %v394
  %396 = vmatmul.f32.gmra.mxu0 %v141
  %v397 = vpop.f32.mrf.mxu0
  %v398 = vadd.f32 0.0, %v397
  %399 = vmatmul.f32.gmra.mxu0 %v144
  %v400 = vpop.f32.mrf.mxu0
  %v401 = vadd.f32 0.0, %v400
  %402 = vmatmul.f32.gmra.mxu0 %v147
  %v403 = vpop.f32.mrf.mxu0
  %v404 = vadd.f32 0.0, %v403
  %405 = vmatmul.f32.gmra.mxu0 %v150
  %v406 = vpop.f32.mrf.mxu0
  %v407 = vadd.f32 0.0, %v406
  %408 = vmatmul.f32.gmra.mxu0 %v153
  %v409 = vpop.f32.mrf.mxu0
  %v410 = vadd.f32 0.0, %v409
  %411 = vmatmul.f32.gmra.mxu0 %v156
  %v412 = vpop.f32.mrf.mxu0
  %v413 = vadd.f32 0.0, %v412
  %414 = vmatmul.f32.gmra.mxu0 %v159
  %v415 = vpop.f32.mrf.mxu0
  %v416 = vadd.f32 0.0, %v415
  %417 = vmatmul.f32.gmra.mxu0 %v162
  %v418 = vpop.f32.mrf.mxu0
  %v419 = vadd.f32 0.0, %v418
  %420 = vmatmul.f32.gmra.mxu0 %v165
  %v421 = vpop.f32.mrf.mxu0
  %v422 = vadd.f32 0.0, %v421
  %423 = vmatmul.f32.gmra.mxu0 %v168
  %v424 = vpop.f32.mrf.mxu0
  %v425 = vadd.f32 0.0, %v424
  %426 = vmatmul.f32.gmra.mxu0 %v171
  %v427 = vpop.f32.mrf.mxu0
  %v428 = vadd.f32 0.0, %v427
  %429 = vmatmul.f32.gmra.mxu0 %v174
  %v430 = vpop.f32.mrf.mxu0
  %v431 = vadd.f32 0.0, %v430
  %432 = vmatmul.f32.gmra.mxu0 %v177
  %v433 = vpop.f32.mrf.mxu0
  %v434 = vadd.f32 0.0, %v433
  %435 = vmatmul.f32.gmra.mxu0 %v180
  %v436 = vpop.f32.mrf.mxu0
  %v437 = vadd.f32 0.0, %v436
  %438 = vmatmul.f32.gmra.mxu0 %v183
  %v439 = vpop.f32.mrf.mxu0
  %v440 = vadd.f32 0.0, %v439
  %441 = vmatmul.f32.gmra.mxu0 %v186
  %v442 = vpop.f32.mrf.mxu0
  %v443 = vadd.f32 0.0, %v442
  %444 = vmatmul.f32.gmra.mxu0 %v189
  %v445 = vpop.f32.mrf.mxu0
  %v446 = vadd.f32 0.0, %v445
  %447 = vmatmul.f32.gmra.mxu0 %v192
  %v448 = vpop.f32.mrf.mxu0
  %v449 = vadd.f32 0.0, %v448
  %450 = vmatmul.f32.gmra.mxu0 %v195
  %v451 = vpop.f32.mrf.mxu0
  %v452 = vadd.f32 0.0, %v451
  %453 = vmatmul.f32.gmra.mxu0 %v198
  %v454 = vpop.f32.mrf.mxu0
  %v455 = vadd.f32 0.0, %v454
  %456 = vmatmul.f32.gmra.mxu0 %v201
  %v457 = vpop.f32.mrf.mxu0
  %v458 = vadd.f32 0.0, %v457
  %459 = vmatmul.f32.gmra.mxu0 %v204
  %v460 = vpop.f32.mrf.mxu0
  %v461 = vadd.f32 0.0, %v460
  %462 = vmatmul.f32.gmra.mxu0 %v207
  %v463 = vpop.f32.mrf.mxu0
  %v464 = vadd.f32 0.0, %v463
  %465 = vmatmul.f32.gmra.mxu0 %v210
  %v466 = vpop.f32.mrf.mxu0
  %v467 = vadd.f32 0.0, %v466
  %468 = vmatmul.f32.gmra.mxu0 %v213
  %v469 = vpop.f32.mrf.mxu0
  %v470 = vadd.f32 0.0, %v469
  %471 = vmatmul.f32.gmra.mxu0 %v216
  %v472 = vpop.f32.mrf.mxu0
  %v473 = vadd.f32 0.0, %v472
  %474 = vmatmul.f32.gmra.mxu0 %v219
  %v475 = vpop.f32.mrf.mxu0
  %v476 = vadd.f32 0.0, %v475
  %477 = vmatmul.f32.gmra.mxu0 %v222
  %v478 = vpop.f32.mrf.mxu0
  %v479 = vadd.f32 0.0, %v478
  %480 = vmatmul.f32.gmra.mxu0 %v225
  %v481 = vpop.f32.mrf.mxu0
  %v482 = vadd.f32 0.0, %v481
  %483 = vmatmul.f32.gmra.mxu0 %v228
  %v484 = vpop.f32.mrf.mxu0
  %v485 = vadd.f32 0.0, %v484
  %486 = vmatmul.f32.gmra.mxu0 %v231
  %v487 = vpop.f32.mrf.mxu0
  %v488 = vadd.f32 0.0, %v487
  %489 = vmatmul.f32.gmra.mxu0 %v234
  %v490 = vpop.f32.mrf.mxu0
  %v491 = vadd.f32 0.0, %v490
  %492 = vmatmul.f32.gmra.mxu0 %v237
  %v493 = vpop.f32.mrf.mxu0
  %v494 = vadd.f32 0.0, %v493
  %495 = vmatmul.f32.gmra.mxu0 %v240
  %v496 = vpop.f32.mrf.mxu0
  %v497 = vadd.f32 0.0, %v496
  %498 = vmatmul.f32.gmra.mxu0 %v243
  %v499 = vpop.f32.mrf.mxu0
  %v500 = vadd.f32 0.0, %v499
  %501 = vmatmul.f32.gmra.mxu0 %v246
  %v502 = vpop.f32.mrf.mxu0
  %v503 = vadd.f32 0.0, %v502
  %504 = vmatmul.f32.gmra.mxu0 %v249
  %v505 = vpop.f32.mrf.mxu0
  %v506 = vadd.f32 0.0, %v505
  %507 = vmatmul.f32.gmra.mxu0 %v252
  %v508 = vpop.f32.mrf.mxu0
  %v509 = vadd.f32 0.0, %v508
  %510 = vmatmul.f32.gmra.mxu0 %v255
  %v511 = vpop.f32.mrf.mxu0
  %v512 = vadd.f32 0.0, %v511
  %513 = vmatmul.f32.gmra.mxu0 %v258
  %v514 = vpop.f32.mrf.mxu0
  %v515 = vadd.f32 0.0, %v514
  %516 = vmatmul.f32.gmra.mxu0 %v261
  %v517 = vpop.f32.mrf.mxu0
  %v518 = vadd.f32 0.0, %v517
  %519 = vmatmul.f32.gmra.mxu0 %v264
  %v520 = vpop.f32.mrf.mxu0
  %v521 = vadd.f32 0.0, %v520
  %522 = vmatmul.f32.gmra.mxu0 %v267
  %v523 = vpop.f32.mrf.mxu0
  %v524 = vadd.f32 0.0, %v523
  %525 = vmatmul.f32.gmra.mxu0 %v270
  %v526 = vpop.f32.mrf.mxu0
  %v527 = vadd.f32 0.0, %v526
  %528 = vmatmul.f32.gmra.mxu0 %v273
  %v529 = vpop.f32.mrf.mxu0
  %v530 = vadd.f32 0.0, %v529
  %531 = vmatmul.f32.gmra.mxu0 %v276
  %v532 = vpop.f32.mrf.mxu0
  %v533 = vadd.f32 0.0, %v532
  %534 = vmatmul.f32.gmra.mxu0 %v279
  %v535 = vpop.f32.mrf.mxu0
  %v536 = vadd.f32 0.0, %v535
  %537 = vmatmul.f32.gmra.mxu0 %v282
  %v538 = vpop.f32.mrf.mxu0
  %v539 = vadd.f32 0.0, %v538
  %540 = vmatmul.f32.gmra.mxu0 %v285
  %v541 = vpop.f32.mrf.mxu0
  %v542 = vadd.f32 0.0, %v541
  %543 = vmatmul.f32.gmra.mxu0 %v288
  %v544 = vpop.f32.mrf.mxu0
  %v545 = vadd.f32 0.0, %v544
  %546 = vmatmul.f32.gmra.mxu0 %v291
  %v547 = vpop.f32.mrf.mxu0
  %v548 = vadd.f32 0.0, %v547
  %549 = vmatmul.f32.gmra.mxu0 %v294
  %v550 = vpop.f32.mrf.mxu0
  %v551 = vadd.f32 0.0, %v550
  %552 = vmatmul.f32.gmra.mxu0 %v297
  %v553 = vpop.f32.mrf.mxu0
  %v554 = vadd.f32 0.0, %v553
  %555 = vmatmul.f32.gmra.mxu0 %v300
  %v556 = vpop.f32.mrf.mxu0
  %v557 = vadd.f32 0.0, %v556
  %558 = vmatmul.f32.gmra.mxu0 %v303
  %v559 = vpop.f32.mrf.mxu0
  %v560 = vadd.f32 0.0, %v559
  %561 = vmatmul.f32.gmra.mxu0 %v306
  %v562 = vpop.f32.mrf.mxu0
  %v563 = vadd.f32 0.0, %v562
  %564 = vmatmul.f32.gmra.mxu0 %v309
  %v565 = vpop.f32.mrf.mxu0
  %v566 = vadd.f32 0.0, %v565
  %567 = vmatmul.f32.gmra.mxu0 %v312
  %v568 = vpop.f32.mrf.mxu0
  %v569 = vadd.f32 0.0, %v568
  %570 = vmatmul.f32.gmra.mxu0 %v315
  %v571 = vpop.f32.mrf.mxu0
  %v572 = vadd.f32 0.0, %v571
  %573 = vmatmul.f32.gmra.mxu0 %v318
  %v574 = vpop.f32.mrf.mxu0
  %v575 = vadd.f32 0.0, %v574
  %576 = vmatmul.f32.gmra.mxu0 %v321
  %v577 = vpop.f32.mrf.mxu0
  %v578 = vadd.f32 0.0, %v577
  %579 = vmatmul.f32.gmra.mxu0 %v324
  %v580 = vpop.f32.mrf.mxu0
  %v581 = vadd.f32 0.0, %v580
  %582 = vmatmul.f32.gmra.mxu0 %v327
  %v583 = vpop.f32.mrf.mxu0
  %v584 = vadd.f32 0.0, %v583
  %585 = vmatmul.f32.gmra.mxu0 %v330
  %v586 = vpop.f32.mrf.mxu0
  %v587 = vadd.f32 0.0, %v586
  %588 = vmatmul.f32.gmra.mxu0 %v333
  %v589 = vpop.f32.mrf.mxu0
  %v590 = vadd.f32 0.0, %v589
  %591 = vmatmul.f32.gmra.mxu0 %v336
  %v592 = vpop.f32.mrf.mxu0
  %v593 = vadd.f32 0.0, %v592
  %594 = vmatmul.f32.gmra.mxu0 %v339
  %v595 = vpop.f32.mrf.mxu0
  %v596 = vadd.f32 0.0, %v595
  %597 = vmatmul.f32.gmra.mxu0 %v342
  %v598 = vpop.f32.mrf.mxu0
  %v599 = vadd.f32 0.0, %v598
  %600 = vmatmul.f32.gmra.mxu0 %v345
  %v601 = vpop.f32.mrf.mxu0
  %v602 = vadd.f32 0.0, %v601
  %603 = vmatmul.f32.gmra.mxu0 %v348
  %v604 = vpop.f32.mrf.mxu0
  %v605 = vadd.f32 0.0, %v604
  %606 = vmatmul.f32.gmra.mxu0 %v351
  %v607 = vpop.f32.mrf.mxu0
  %v608 = vadd.f32 0.0, %v607
  %609 = vmatmul.f32.gmra.mxu0 %v354
  %v610 = vpop.f32.mrf.mxu0
  %v611 = vadd.f32 0.0, %v610
  %612 = vmatmul.f32.gmra.mxu0 %v357
  %v613 = vpop.f32.mrf.mxu0
  %v614 = vadd.f32 0.0, %v613
  %615 = vdwg.mxu0
  %616 = vmatpush.msra.mxu0 %v422
  %617 = vmatpush.msra.mxu0 %v419
  %618 = vmatpush.msra.mxu0 %v416
  %619 = vmatpush.msra.mxu0 %v413
  %620 = vmatpush.msra.mxu0 %v410
  %621 = vmatpush.msra.mxu0 %v407
  %622 = vmatpush.msra.mxu0 %v404
  %623 = vmatpush.msra.mxu0 %v401
  %624 = vmatpush.msra.mxu0 %v398
  %625 = vmatpush.msra.mxu0 %v395
  %626 = vmatpush.msra.mxu0 %v392
  %627 = vmatpush.msra.mxu0 %v389
  %628 = vmatpush.msra.mxu0 %v386
  %629 = vmatpush.msra.mxu0 %v383
  %630 = vmatpush.msra.mxu0 %v380
  %631 = vmatpush.msra.mxu0 %v377
  %632 = vmatmul.f32.gmra.mxu0 %v54
  %v633 = vpop.f32.mrf.mxu0
  %v634 = vadd.f32 0.0, %v633
  %635 = vmatmul.f32.gmra.mxu0 %v55
  %v636 = vpop.f32.mrf.mxu0
  %v637 = vadd.f32 0.0, %v636
  %638 = vmatmul.f32.gmra.mxu0 %v56
  %v639 = vpop.f32.mrf.mxu0
  %v640 = vadd.f32 0.0, %v639
  %641 = vmatmul.f32.gmra.mxu0 %v57
  %v642 = vpop.f32.mrf.mxu0
  %v643 = vadd.f32 0.0, %v642
  %644 = vmatmul.f32.gmra.mxu0 %v58
  %v645 = vpop.f32.mrf.mxu0
  %v646 = vadd.f32 0.0, %v645
  %647 = vmatmul.f32.gmra.mxu0 %v59
  %v648 = vpop.f32.mrf.mxu0
  %v649 = vadd.f32 0.0, %v648
  %650 = vmatmul.f32.gmra.mxu0 %v60
  %v651 = vpop.f32.mrf.mxu0
  %v652 = vadd.f32 0.0, %v651
  %653 = vmatmul.f32.gmra.mxu0 %v61
  %v654 = vpop.f32.mrf.mxu0
  %v655 = vadd.f32 0.0, %v654
  %656 = vmatmul.f32.gmra.mxu0 %v62
  %v657 = vpop.f32.mrf.mxu0
  %v658 = vadd.f32 0.0, %v657
  %659 = vmatmul.f32.gmra.mxu0 %v63
  %v660 = vpop.f32.mrf.mxu0
  %v661 = vadd.f32 0.0, %v660
  %662 = vmatmul.f32.gmra.mxu0 %v64
  %v663 = vpop.f32.mrf.mxu0
  %v664 = vadd.f32 0.0, %v663
  %665 = vmatmul.f32.gmra.mxu0 %v65
  %v666 = vpop.f32.mrf.mxu0
  %v667 = vadd.f32 0.0, %v666
  %668 = vmatmul.f32.gmra.mxu0 %v66
  %v669 = vpop.f32.mrf.mxu0
  %v670 = vadd.f32 0.0, %v669
  %671 = vmatmul.f32.gmra.mxu0 %v67
  %v672 = vpop.f32.mrf.mxu0
  %v673 = vadd.f32 0.0, %v672
  %674 = vmatmul.f32.gmra.mxu0 %v68
  %v675 = vpop.f32.mrf.mxu0
  %v676 = vadd.f32 0.0, %v675
  %677 = vmatmul.f32.gmra.mxu0 %v69
  %v678 = vpop.f32.mrf.mxu0
  %v679 = vadd.f32 0.0, %v678
  %680 = vdwg.mxu0
  %681 = vmatpush.msra.mxu0 %v470
  %682 = vmatpush.msra.mxu0 %v467
  %683 = vmatpush.msra.mxu0 %v464
  %684 = vmatpush.msra.mxu0 %v461
  %685 = vmatpush.msra.mxu0 %v458
  %686 = vmatpush.msra.mxu0 %v455
  %687 = vmatpush.msra.mxu0 %v452
  %688 = vmatpush.msra.mxu0 %v449
  %689 = vmatpush.msra.mxu0 %v446
  %690 = vmatpush.msra.mxu0 %v443
  %691 = vmatpush.msra.mxu0 %v440
  %692 = vmatpush.msra.mxu0 %v437
  %693 = vmatpush.msra.mxu0 %v434
  %694 = vmatpush.msra.mxu0 %v431
  %695 = vmatpush.msra.mxu0 %v428
  %696 = vmatpush.msra.mxu0 %v425
  %697 = vmatmul.f32.gmra.mxu0 %v54
  %v698 = vpop.f32.mrf.mxu0
  %v699 = vadd.f32 0.0, %v698
  %700 = vmatmul.f32.gmra.mxu0 %v55
  %v701 = vpop.f32.mrf.mxu0
  %v702 = vadd.f32 0.0, %v701
  %703 = vmatmul.f32.gmra.mxu0 %v56
  %v704 = vpop.f32.mrf.mxu0
  %v705 = vadd.f32 0.0, %v704
  %706 = vmatmul.f32.gmra.mxu0 %v57
  %v707 = vpop.f32.mrf.mxu0
  %v708 = vadd.f32 0.0, %v707
  %709 = vmatmul.f32.gmra.mxu0 %v58
  %v710 = vpop.f32.mrf.mxu0
  %v711 = vadd.f32 0.0, %v710
  %712 = vmatmul.f32.gmra.mxu0 %v59
  %v713 = vpop.f32.mrf.mxu0
  %v714 = vadd.f32 0.0, %v713
  %715 = vmatmul.f32.gmra.mxu0 %v60
  %v716 = vpop.f32.mrf.mxu0
  %v717 = vadd.f32 0.0, %v716
  %718 = vmatmul.f32.gmra.mxu0 %v61
  %v719 = vpop.f32.mrf.mxu0
  %v720 = vadd.f32 0.0, %v719
  %721 = vmatmul.f32.gmra.mxu0 %v62
  %v722 = vpop.f32.mrf.mxu0
  %v723 = vadd.f32 0.0, %v722
  %724 = vmatmul.f32.gmra.mxu0 %v63
  %v725 = vpop.f32.mrf.mxu0
  %v726 = vadd.f32 0.0, %v725
  %727 = vmatmul.f32.gmra.mxu0 %v64
  %v728 = vpop.f32.mrf.mxu0
  %v729 = vadd.f32 0.0, %v728
  %730 = vmatmul.f32.gmra.mxu0 %v65
  %v731 = vpop.f32.mrf.mxu0
  %v732 = vadd.f32 0.0, %v731
  %733 = vmatmul.f32.gmra.mxu0 %v66
  %v734 = vpop.f32.mrf.mxu0
  %v735 = vadd.f32 0.0, %v734
  %736 = vmatmul.f32.gmra.mxu0 %v67
  %v737 = vpop.f32.mrf.mxu0
  %v738 = vadd.f32 0.0, %v737
  %739 = vmatmul.f32.gmra.mxu0 %v68
  %v740 = vpop.f32.mrf.mxu0
  %v741 = vadd.f32 0.0, %v740
  %742 = vmatmul.f32.gmra.mxu0 %v69
  %v743 = vpop.f32.mrf.mxu0
  %v744 = vadd.f32 0.0, %v743
  %745 = vdwg.mxu0
  %746 = vmatpush.msra.mxu0 %v518
  %747 = vmatpush.msra.mxu0 %v515
  %748 = vmatpush.msra.mxu0 %v512
  %749 = vmatpush.msra.mxu0 %v509
  %750 = vmatpush.msra.mxu0 %v506
  %751 = vmatpush.msra.mxu0 %v503
  %752 = vmatpush.msra.mxu0 %v500
  %753 = vmatpush.msra.mxu0 %v497
  %754 = vmatpush.msra.mxu0 %v494
  %755 = vmatpush.msra.mxu0 %v491
  %756 = vmatpush.msra.mxu0 %v488
  %757 = vmatpush.msra.mxu0 %v485
  %758 = vmatpush.msra.mxu0 %v482
  %759 = vmatpush.msra.mxu0 %v479
  %760 = vmatpush.msra.mxu0 %v476
  %761 = vmatpush.msra.mxu0 %v473
  %762 = vmatmul.f32.gmra.mxu0 %v54
  %v763 = vpop.f32.mrf.mxu0
  %v764 = vadd.f32 0.0, %v763
  %765 = vmatmul.f32.gmra.mxu0 %v55
  %v766 = vpop.f32.mrf.mxu0
  %v767 = vadd.f32 0.0, %v766
  %768 = vmatmul.f32.gmra.mxu0 %v56
  %v769 = vpop.f32.mrf.mxu0
  %v770 = vadd.f32 0.0, %v769
  %771 = vmatmul.f32.gmra.mxu0 %v57
  %v772 = vpop.f32.mrf.mxu0
  %v773 = vadd.f32 0.0, %v772
  %774 = vmatmul.f32.gmra.mxu0 %v58
  %v775 = vpop.f32.mrf.mxu0
  %v776 = vadd.f32 0.0, %v775
  %777 = vmatmul.f32.gmra.mxu0 %v59
  %v778 = vpop.f32.mrf.mxu0
  %v779 = vadd.f32 0.0, %v778
  %780 = vmatmul.f32.gmra.mxu0 %v60
  %v781 = vpop.f32.mrf.mxu0
  %v782 = vadd.f32 0.0, %v781
  %783 = vmatmul.f32.gmra.mxu0 %v61
  %v784 = vpop.f32.mrf.mxu0
  %v785 = vadd.f32 0.0, %v784
  %786 = vmatmul.f32.gmra.mxu0 %v62
  %v787 = vpop.f32.mrf.mxu0
  %v788 = vadd.f32 0.0, %v787
  %789 = vmatmul.f32.gmra.mxu0 %v63
  %v790 = vpop.f32.mrf.mxu0
  %v791 = vadd.f32 0.0, %v790
  %792 = vmatmul.f32.gmra.mxu0 %v64
  %v793 = vpop.f32.mrf.mxu0
  %v794 = vadd.f32 0.0, %v793
  %795 = vmatmul.f32.gmra.mxu0 %v65
  %v796 = vpop.f32.mrf.mxu0
  %v797 = vadd.f32 0.0, %v796
  %798 = vmatmul.f32.gmra.mxu0 %v66
  %v799 = vpop.f32.mrf.mxu0
  %v800 = vadd.f32 0.0, %v799
  %801 = vmatmul.f32.gmra.mxu0 %v67
  %v802 = vpop.f32.mrf.mxu0
  %v803 = vadd.f32 0.0, %v802
  %804 = vmatmul.f32.gmra.mxu0 %v68
  %v805 = vpop.f32.mrf.mxu0
  %v806 = vadd.f32 0.0, %v805
  %807 = vmatmul.f32.gmra.mxu0 %v69
  %v808 = vpop.f32.mrf.mxu0
  %v809 = vadd.f32 0.0, %v808
  %810 = vdwg.mxu0
  %811 = vmatpush.msra.mxu0 %v566
  %812 = vmatpush.msra.mxu0 %v563
  %813 = vmatpush.msra.mxu0 %v560
  %814 = vmatpush.msra.mxu0 %v557
  %815 = vmatpush.msra.mxu0 %v554
  %816 = vmatpush.msra.mxu0 %v551
  %817 = vmatpush.msra.mxu0 %v548
  %818 = vmatpush.msra.mxu0 %v545
  %819 = vmatpush.msra.mxu0 %v542
  %820 = vmatpush.msra.mxu0 %v539
  %821 = vmatpush.msra.mxu0 %v536
  %822 = vmatpush.msra.mxu0 %v533
  %823 = vmatpush.msra.mxu0 %v530
  %824 = vmatpush.msra.mxu0 %v527
  %825 = vmatpush.msra.mxu0 %v524
  %826 = vmatpush.msra.mxu0 %v521
  %827 = vmatmul.f32.gmra.mxu0 %v54
  %v828 = vpop.f32.mrf.mxu0
  %v829 = vadd.f32 0.0, %v828
  %830 = vmatmul.f32.gmra.mxu0 %v55
  %v831 = vpop.f32.mrf.mxu0
  %v832 = vadd.f32 0.0, %v831
  %833 = vmatmul.f32.gmra.mxu0 %v56
  %v834 = vpop.f32.mrf.mxu0
  %v835 = vadd.f32 0.0, %v834
  %836 = vmatmul.f32.gmra.mxu0 %v57
  %v837 = vpop.f32.mrf.mxu0
  %v838 = vadd.f32 0.0, %v837
  %839 = vmatmul.f32.gmra.mxu0 %v58
  %v840 = vpop.f32.mrf.mxu0
  %v841 = vadd.f32 0.0, %v840
  %842 = vmatmul.f32.gmra.mxu0 %v59
  %v843 = vpop.f32.mrf.mxu0
  %v844 = vadd.f32 0.0, %v843
  %845 = vmatmul.f32.gmra.mxu0 %v60
  %v846 = vpop.f32.mrf.mxu0
  %v847 = vadd.f32 0.0, %v846
  %848 = vmatmul.f32.gmra.mxu0 %v61
  %v849 = vpop.f32.mrf.mxu0
  %v850 = vadd.f32 0.0, %v849
  %851 = vmatmul.f32.gmra.mxu0 %v62
  %v852 = vpop.f32.mrf.mxu0
  %v853 = vadd.f32 0.0, %v852
  %854 = vmatmul.f32.gmra.mxu0 %v63
  %v855 = vpop.f32.mrf.mxu0
  %v856 = vadd.f32 0.0, %v855
  %857 = vmatmul.f32.gmra.mxu0 %v64
  %v858 = vpop.f32.mrf.mxu0
  %v859 = vadd.f32 0.0, %v858
  %860 = vmatmul.f32.gmra.mxu0 %v65
  %v861 = vpop.f32.mrf.mxu0
  %v862 = vadd.f32 0.0, %v861
  %863 = vmatmul.f32.gmra.mxu0 %v66
  %v864 = vpop.f32.mrf.mxu0
  %v865 = vadd.f32 0.0, %v864
  %866 = vmatmul.f32.gmra.mxu0 %v67
  %v867 = vpop.f32.mrf.mxu0
  %v868 = vadd.f32 0.0, %v867
  %869 = vmatmul.f32.gmra.mxu0 %v68
  %v870 = vpop.f32.mrf.mxu0
  %v871 = vadd.f32 0.0, %v870
  %872 = vmatmul.f32.gmra.mxu0 %v69
  %v873 = vpop.f32.mrf.mxu0
  %v874 = vadd.f32 0.0, %v873
  %875 = vdwg.mxu0
  %876 = vmatpush.msra.mxu0 %v614
  %877 = vmatpush.msra.mxu0 %v611
  %878 = vmatpush.msra.mxu0 %v608
  %879 = vmatpush.msra.mxu0 %v605
  %880 = vmatpush.msra.mxu0 %v602
  %881 = vmatpush.msra.mxu0 %v599
  %882 = vmatpush.msra.mxu0 %v596
  %883 = vmatpush.msra.mxu0 %v593
  %884 = vmatpush.msra.mxu0 %v590
  %885 = vmatpush.msra.mxu0 %v587
  %886 = vmatpush.msra.mxu0 %v584
  %887 = vmatpush.msra.mxu0 %v581
  %888 = vmatpush.msra.mxu0 %v578
  %889 = vmatpush.msra.mxu0 %v575
  %890 = vmatpush.msra.mxu0 %v572
  %891 = vmatpush.msra.mxu0 %v569
  %892 = vmatmul.f32.gmra.mxu0 %v54
  %v893 = vpop.f32.mrf.mxu0
  %v894 = vadd.f32 0.0, %v893
  %895 = vmatmul.f32.gmra.mxu0 %v55
  %v896 = vpop.f32.mrf.mxu0
  %v897 = vadd.f32 0.0, %v896
  %898 = vmatmul.f32.gmra.mxu0 %v56
  %v899 = vpop.f32.mrf.mxu0
  %v900 = vadd.f32 0.0, %v899
  %901 = vmatmul.f32.gmra.mxu0 %v57
  %v902 = vpop.f32.mrf.mxu0
  %v903 = vadd.f32 0.0, %v902
  %904 = vmatmul.f32.gmra.mxu0 %v58
  %v905 = vpop.f32.mrf.mxu0
  %v906 = vadd.f32 0.0, %v905
  %907 = vmatmul.f32.gmra.mxu0 %v59
  %v908 = vpop.f32.mrf.mxu0
  %v909 = vadd.f32 0.0, %v908
  %910 = vmatmul.f32.gmra.mxu0 %v60
  %v911 = vpop.f32.mrf.mxu0
  %v912 = vadd.f32 0.0, %v911
  %913 = vmatmul.f32.gmra.mxu0 %v61
  %v914 = vpop.f32.mrf.mxu0
  %v915 = vadd.f32 0.0, %v914
  %916 = vmatmul.f32.gmra.mxu0 %v62
  %v917 = vpop.f32.mrf.mxu0
  %v918 = vadd.f32 0.0, %v917
  %919 = vmatmul.f32.gmra.mxu0 %v63
  %v920 = vpop.f32.mrf.mxu0
  %v921 = vadd.f32 0.0, %v920
  %922 = vmatmul.f32.gmra.mxu0 %v64
  %v923 = vpop.f32.mrf.mxu0
  %v924 = vadd.f32 0.0, %v923
  %925 = vmatmul.f32.gmra.mxu0 %v65
  %v926 = vpop.f32.mrf.mxu0
  %v927 = vadd.f32 0.0, %v926
  %928 = vmatmul.f32.gmra.mxu0 %v66
  %v929 = vpop.f32.mrf.mxu0
  %v930 = vadd.f32 0.0, %v929
  %931 = vmatmul.f32.gmra.mxu0 %v67
  %v932 = vpop.f32.mrf.mxu0
  %v933 = vadd.f32 0.0, %v932
  %934 = vmatmul.f32.gmra.mxu0 %v68
  %v935 = vpop.f32.mrf.mxu0
  %v936 = vadd.f32 0.0, %v935
  %937 = vmatmul.f32.gmra.mxu0 %v69
  %v938 = vpop.f32.mrf.mxu0
  %v939 = vadd.f32 0.0, %v938
  %940 = vdwg.mxu0
  %v941 = vmul.f32 %v634, %v634
  %v942 = vmul.f32 %v637, %v637
  %v943 = vmul.f32 %v640, %v640
  %v944 = vmul.f32 %v643, %v643
  %v945 = vmul.f32 %v646, %v646
  %v946 = vmul.f32 %v649, %v649
  %v947 = vmul.f32 %v652, %v652
  %v948 = vmul.f32 %v655, %v655
  %v949 = vmul.f32 %v658, %v658
  %v950 = vmul.f32 %v661, %v661
  %v951 = vmul.f32 %v664, %v664
  %v952 = vmul.f32 %v667, %v667
  %v953 = vmul.f32 %v670, %v670
  %v954 = vmul.f32 %v673, %v673
  %v955 = vmul.f32 %v676, %v676
  %v956 = vmul.f32 %v679, %v679
  %v957 = vmul.f32 %v699, %v699
  %v958 = vmul.f32 %v702, %v702
  %v959 = vmul.f32 %v705, %v705
  %v960 = vmul.f32 %v708, %v708
  %v961 = vmul.f32 %v711, %v711
  %v962 = vmul.f32 %v714, %v714
  %v963 = vmul.f32 %v717, %v717
  %v964 = vmul.f32 %v720, %v720
  %v965 = vmul.f32 %v723, %v723
  %v966 = vmul.f32 %v726, %v726
  %v967 = vmul.f32 %v729, %v729
  %v968 = vmul.f32 %v732, %v732
  %v969 = vmul.f32 %v735, %v735
  %v970 = vmul.f32 %v738, %v738
  %v971 = vmul.f32 %v741, %v741
  %v972 = vmul.f32 %v744, %v744
  %v973 = vmul.f32 %v634, %v699
  %v974 = vmul.f32 %v637, %v702
  %v975 = vmul.f32 %v640, %v705
  %v976 = vmul.f32 %v643, %v708
  %v977 = vmul.f32 %v646, %v711
  %v978 = vmul.f32 %v649, %v714
  %v979 = vmul.f32 %v652, %v717
  %v980 = vmul.f32 %v655, %v720
  %v981 = vmul.f32 %v658, %v723
  %v982 = vmul.f32 %v661, %v726
  %v983 = vmul.f32 %v664, %v729
  %v984 = vmul.f32 %v667, %v732
  %v985 = vmul.f32 %v670, %v735
  %v986 = vmul.f32 %v673, %v738
  %v987 = vmul.f32 %v676, %v741
  %v988 = vmul.f32 %v679, %v744
  %v989 = vsub.f32 %v764, %v941
  %v990 = vsub.f32 %v767, %v942
  %v991 = vsub.f32 %v770, %v943
  %v992 = vsub.f32 %v773, %v944
  %v993 = vsub.f32 %v776, %v945
  %v994 = vsub.f32 %v779, %v946
  %v995 = vsub.f32 %v782, %v947
  %v996 = vsub.f32 %v785, %v948
  %v997 = vsub.f32 %v788, %v949
  %v998 = vsub.f32 %v791, %v950
  %v999 = vsub.f32 %v794, %v951
  %v1000 = vsub.f32 %v797, %v952
  %v1001 = vsub.f32 %v800, %v953
  %v1002 = vsub.f32 %v803, %v954
  %v1003 = vsub.f32 %v806, %v955
  %v1004 = vsub.f32 %v809, %v956
  %v1005 = vsub.f32 %v829, %v957
  %v1006 = vsub.f32 %v832, %v958
  %v1007 = vsub.f32 %v835, %v959
  %v1008 = vsub.f32 %v838, %v960
  %v1009 = vsub.f32 %v841, %v961
  %v1010 = vsub.f32 %v844, %v962
  %v1011 = vsub.f32 %v847, %v963
  %v1012 = vsub.f32 %v850, %v964
  %v1013 = vsub.f32 %v853, %v965
  %v1014 = vsub.f32 %v856, %v966
  %v1015 = vsub.f32 %v859, %v967
  %v1016 = vsub.f32 %v862, %v968
  %v1017 = vsub.f32 %v865, %v969
  %v1018 = vsub.f32 %v868, %v970
  %v1019 = vsub.f32 %v871, %v971
  %v1020 = vsub.f32 %v874, %v972
  %v1021 = vsub.f32 %v894, %v973
  %v1022 = vsub.f32 %v897, %v974
  %v1023 = vsub.f32 %v900, %v975
  %v1024 = vsub.f32 %v903, %v976
  %v1025 = vsub.f32 %v906, %v977
  %v1026 = vsub.f32 %v909, %v978
  %v1027 = vsub.f32 %v912, %v979
  %v1028 = vsub.f32 %v915, %v980
  %v1029 = vsub.f32 %v918, %v981
  %v1030 = vsub.f32 %v921, %v982
  %v1031 = vsub.f32 %v924, %v983
  %v1032 = vsub.f32 %v927, %v984
  %v1033 = vsub.f32 %v930, %v985
  %v1034 = vsub.f32 %v933, %v986
  %v1035 = vsub.f32 %v936, %v987
  %v1036 = vsub.f32 %v939, %v988
  %v1037 = vmul.f32 %v973, 2.0
  %v1038 = vmul.f32 %v974, 2.0
  %v1039 = vmul.f32 %v975, 2.0
  %v1040 = vmul.f32 %v976, 2.0
  %v1041 = vmul.f32 %v977, 2.0
  %v1042 = vmul.f32 %v978, 2.0
  %v1043 = vmul.f32 %v979, 2.0
  %v1044 = vmul.f32 %v980, 2.0
  %v1045 = vmul.f32 %v981, 2.0
  %v1046 = vmul.f32 %v982, 2.0
  %v1047 = vmul.f32 %v983, 2.0
  %v1048 = vmul.f32 %v984, 2.0
  %v1049 = vmul.f32 %v985, 2.0
  %v1050 = vmul.f32 %v986, 2.0
  %v1051 = vmul.f32 %v987, 2.0
  %v1052 = vmul.f32 %v988, 2.0
  %v1053 = vadd.f32 %v1037, 0.0001
  %v1054 = vadd.f32 %v1038, 0.0001
  %v1055 = vadd.f32 %v1039, 0.0001
  %v1056 = vadd.f32 %v1040, 0.0001
  %v1057 = vadd.f32 %v1041, 0.0001
  %v1058 = vadd.f32 %v1042, 0.0001
  %v1059 = vadd.f32 %v1043, 0.0001
  %v1060 = vadd.f32 %v1044, 0.0001
  %v1061 = vadd.f32 %v1045, 0.0001
  %v1062 = vadd.f32 %v1046, 0.0001
  %v1063 = vadd.f32 %v1047, 0.0001
  %v1064 = vadd.f32 %v1048, 0.0001
  %v1065 = vadd.f32 %v1049, 0.0001
  %v1066 = vadd.f32 %v1050, 0.0001
  %v1067 = vadd.f32 %v1051, 0.0001
  %v1068 = vadd.f32 %v1052, 0.0001
  %v1069 = vmul.f32 %v1021, 2.0
  %v1070 = vmul.f32 %v1022, 2.0
  %v1071 = vmul.f32 %v1023, 2.0
  %v1072 = vmul.f32 %v1024, 2.0
  %v1073 = vmul.f32 %v1025, 2.0
  %v1074 = vmul.f32 %v1026, 2.0
  %v1075 = vmul.f32 %v1027, 2.0
  %v1076 = vmul.f32 %v1028, 2.0
  %v1077 = vmul.f32 %v1029, 2.0
  %v1078 = vmul.f32 %v1030, 2.0
  %v1079 = vmul.f32 %v1031, 2.0
  %v1080 = vmul.f32 %v1032, 2.0
  %v1081 = vmul.f32 %v1033, 2.0
  %v1082 = vmul.f32 %v1034, 2.0
  %v1083 = vmul.f32 %v1035, 2.0
  %v1084 = vmul.f32 %v1036, 2.0
  %v1085 = vadd.f32 %v1069, 0.0009
  %v1086 = vadd.f32 %v1070, 0.0009
  %v1087 = vadd.f32 %v1071, 0.0009
  %v1088 = vadd.f32 %v1072, 0.0009
  %v1089 = vadd.f32 %v1073, 0.0009
  %v1090 = vadd.f32 %v1074, 0.0009
  %v1091 = vadd.f32 %v1075, 0.0009
  %v1092 = vadd.f32 %v1076, 0.0009
  %v1093 = vadd.f32 %v1077, 0.0009
  %v1094 = vadd.f32 %v1078, 0.0009
  %v1095 = vadd.f32 %v1079, 0.0009
  %v1096 = vadd.f32 %v1080, 0.0009
  %v1097 = vadd.f32 %v1081, 0.0009
  %v1098 = vadd.f32 %v1082, 0.0009
  %v1099 = vadd.f32 %v1083, 0.0009
  %v1100 = vadd.f32 %v1084, 0.0009
  %v1101 = vmul.f32 %v1053, %v1085
  %v1102 = vmul.f32 %v1054, %v1086
  %v1103 = vmul.f32 %v1055, %v1087
  %v1104 = vmul.f32 %v1056, %v1088
  %v1105 = vmul.f32 %v1057, %v1089
  %v1106 = vmul.f32 %v1058, %v1090
  %v1107 = vmul.f32 %v1059, %v1091
  %v1108 = vmul.f32 %v1060, %v1092
  %v1109 = vmul.f32 %v1061, %v1093
  %v1110 = vmul.f32 %v1062, %v1094
  %v1111 = vmul.f32 %v1063, %v1095
  %v1112 = vmul.f32 %v1064, %v1096
  %v1113 = vmul.f32 %v1065, %v1097
  %v1114 = vmul.f32 %v1066, %v1098
  %v1115 = vmul.f32 %v1067, %v1099
  %v1116 = vmul.f32 %v1068, %v1100
  %v1117 = vadd.f32 %v941, %v957
  %v1118 = vadd.f32 %v942, %v958
  %v1119 = vadd.f32 %v943, %v959
  %v1120 = vadd.f32 %v944, %v960
  %v1121 = vadd.f32 %v945, %v961
  %v1122 = vadd.f32 %v946, %v962
  %v1123 = vadd.f32 %v947, %v963
  %v1124 = vadd.f32 %v948, %v964
  %v1125 = vadd.f32 %v949, %v965
  %v1126 = vadd.f32 %v950, %v966
  %v1127 = vadd.f32 %v951, %v967
  %v1128 = vadd.f32 %v952, %v968
  %v1129 = vadd.f32 %v953, %v969
  %v1130 = vadd.f32 %v954, %v970
  %v1131 = vadd.f32 %v955, %v971
  %v1132 = vadd.f32 %v956, %v972
  %v1133 = vadd.f32 %v1117, 0.0001
  %v1134 = vadd.f32 %v1118, 0.0001
  %v1135 = vadd.f32 %v1119, 0.0001
  %v1136 = vadd.f32 %v1120, 0.0001
  %v1137 = vadd.f32 %v1121, 0.0001
  %v1138 = vadd.f32 %v1122, 0.0001
  %v1139 = vadd.f32 %v1123, 0.0001
  %v1140 = vadd.f32 %v1124, 0.0001
  %v1141 = vadd.f32 %v1125, 0.0001
  %v1142 = vadd.f32 %v1126, 0.0001
  %v1143 = vadd.f32 %v1127, 0.0001
  %v1144 = vadd.f32 %v1128, 0.0001
  %v1145 = vadd.f32 %v1129, 0.0001
  %v1146 = vadd.f32 %v1130, 0.0001
  %v1147 = vadd.f32 %v1131, 0.0001
  %v1148 = vadd.f32 %v1132, 0.0001
  %v1149 = vadd.f32 %v989, %v1005
  %v1150 = vadd.f32 %v990, %v1006
  %v1151 = vadd.f32 %v991, %v1007
  %v1152 = vadd.f32 %v992, %v1008
  %v1153 = vadd.f32 %v993, %v1009
  %v1154 = vadd.f32 %v994, %v1010
  %v1155 = vadd.f32 %v995, %v1011
  %v1156 = vadd.f32 %v996, %v1012
  %v1157 = vadd.f32 %v997, %v1013
  %v1158 = vadd.f32 %v998, %v1014
  %v1159 = vadd.f32 %v999, %v1015
  %v1160 = vadd.f32 %v1000, %v1016
  %v1161 = vadd.f32 %v1001, %v1017
  %v1162 = vadd.f32 %v1002, %v1018
  %v1163 = vadd.f32 %v1003, %v1019
  %v1164 = vadd.f32 %v1004, %v1020
  %v1165 = vadd.f32 %v1149, 0.0009
  %v1166 = vadd.f32 %v1150, 0.0009
  %v1167 = vadd.f32 %v1151, 0.0009
  %v1168 = vadd.f32 %v1152, 0.0009
  %v1169 = vadd.f32 %v1153, 0.0009
  %v1170 = vadd.f32 %v1154, 0.0009
  %v1171 = vadd.f32 %v1155, 0.0009
  %v1172 = vadd.f32 %v1156, 0.0009
  %v1173 = vadd.f32 %v1157, 0.0009
  %v1174 = vadd.f32 %v1158, 0.0009
  %v1175 = vadd.f32 %v1159, 0.0009
  %v1176 = vadd.f32 %v1160, 0.0009
  %v1177 = vadd.f32 %v1161, 0.0009
  %v1178 = vadd.f32 %v1162, 0.0009
  %v1179 = vadd.f32 %v1163, 0.0009
  %v1180 = vadd.f32 %v1164, 0.0009
  %v1181 = vmul.f32 %v1133, %v1165
  %v1182 = vmul.f32 %v1134, %v1166
  %v1183 = vmul.f32 %v1135, %v1167
  %v1184 = vmul.f32 %v1136, %v1168
  %v1185 = vmul.f32 %v1137, %v1169
  %v1186 = vmul.f32 %v1138, %v1170
  %v1187 = vmul.f32 %v1139, %v1171
  %v1188 = vmul.f32 %v1140, %v1172
  %v1189 = vmul.f32 %v1141, %v1173
  %v1190 = vmul.f32 %v1142, %v1174
  %v1191 = vmul.f32 %v1143, %v1175
  %v1192 = vmul.f32 %v1144, %v1176
  %v1193 = vmul.f32 %v1145, %v1177
  %v1194 = vmul.f32 %v1146, %v1178
  %v1195 = vmul.f32 %v1147, %v1179
  %v1196 = vmul.f32 %v1148, %v1180
  %v1197 = vrcp.pop %v1181
  %v1198 = vmul.f32 %v1181, %v1197
  %v1199 = vsub.f32 1.0, %v1198
  %v1200 = vmul.f32 %v1197, %v1199
  %v1201 = vadd.f32 %v1197, %v1200
  %vm1202 = vweird.f32 %v1181
  %vm1203 = vweird.f32 %v1197
  %vm1204 = vmor %vm1202, %vm1203
  %v1205 = vsel %vm1204, %v1197, %v1201
  %v1206 = vand.u32 2147483647, %v1181
  %vm1207 = vcmp.eq.f32.partialorder %v1206, 8.507059e+37
  %v1208 = vand.u32 %v1181, 2147483648
  %v1209 = vor.u32 1.1754944e-38, %v1208
  %v1210 = vsel %vm1207, %v1209, %v1205
  %v1211 = vmul.f32 %v1101, %v1210
  %v1212 = vrcp.pop %v1182
  %v1213 = vmul.f32 %v1182, %v1212
  %v1214 = vsub.f32 1.0, %v1213
  %v1215 = vmul.f32 %v1212, %v1214
  %v1216 = vadd.f32 %v1212, %v1215
  %vm1217 = vweird.f32 %v1182
  %vm1218 = vweird.f32 %v1212
  %vm1219 = vmor %vm1217, %vm1218
  %v1220 = vsel %vm1219, %v1212, %v1216
  %v1221 = vand.u32 2147483647, %v1182
  %vm1222 = vcmp.eq.f32.partialorder %v1221, 8.507059e+37
  %v1223 = vand.u32 %v1182, 2147483648
  %v1224 = vor.u32 1.1754944e-38, %v1223
  %v1225 = vsel %vm1222, %v1224, %v1220
  %v1226 = vmul.f32 %v1102, %v1225
  %v1227 = vrcp.pop %v1183
  %v1228 = vmul.f32 %v1183, %v1227
  %v1229 = vsub.f32 1.0, %v1228
  %v1230 = vmul.f32 %v1227, %v1229
  %v1231 = vadd.f32 %v1227, %v1230
  %vm1232 = vweird.f32 %v1183
  %vm1233 = vweird.f32 %v1227
  %vm1234 = vmor %vm1232, %vm1233
  %v1235 = vsel %vm1234, %v1227, %v1231
  %v1236 = vand.u32 2147483647, %v1183
  %vm1237 = vcmp.eq.f32.partialorder %v1236, 8.507059e+37
  %v1238 = vand.u32 %v1183, 2147483648
  %v1239 = vor.u32 1.1754944e-38, %v1238
  %v1240 = vsel %vm1237, %v1239, %v1235
  %v1241 = vmul.f32 %v1103, %v1240
  %v1242 = vrcp.pop %v1184
  %v1243 = vmul.f32 %v1184, %v1242
  %v1244 = vsub.f32 1.0, %v1243
  %v1245 = vmul.f32 %v1242, %v1244
  %v1246 = vadd.f32 %v1242, %v1245
  %vm1247 = vweird.f32 %v1184
  %vm1248 = vweird.f32 %v1242
  %vm1249 = vmor %vm1247, %vm1248
  %v1250 = vsel %vm1249, %v1242, %v1246
  %v1251 = vand.u32 2147483647, %v1184
  %vm1252 = vcmp.eq.f32.partialorder %v1251, 8.507059e+37
  %v1253 = vand.u32 %v1184, 2147483648
  %v1254 = vor.u32 1.1754944e-38, %v1253
  %v1255 = vsel %vm1252, %v1254, %v1250
  %v1256 = vmul.f32 %v1104, %v1255
  %v1257 = vrcp.pop %v1185
  %v1258 = vmul.f32 %v1185, %v1257
  %v1259 = vsub.f32 1.0, %v1258
  %v1260 = vmul.f32 %v1257, %v1259
  %v1261 = vadd.f32 %v1257, %v1260
  %vm1262 = vweird.f32 %v1185
  %vm1263 = vweird.f32 %v1257
  %vm1264 = vmor %vm1262, %vm1263
  %v1265 = vsel %vm1264, %v1257, %v1261
  %v1266 = vand.u32 2147483647, %v1185
  %vm1267 = vcmp.eq.f32.partialorder %v1266, 8.507059e+37
  %v1268 = vand.u32 %v1185, 2147483648
  %v1269 = vor.u32 1.1754944e-38, %v1268
  %v1270 = vsel %vm1267, %v1269, %v1265
  %v1271 = vmul.f32 %v1105, %v1270
  %v1272 = vrcp.pop %v1186
  %v1273 = vmul.f32 %v1186, %v1272
  %v1274 = vsub.f32 1.0, %v1273
  %v1275 = vmul.f32 %v1272, %v1274
  %v1276 = vadd.f32 %v1272, %v1275
  %vm1277 = vweird.f32 %v1186
  %vm1278 = vweird.f32 %v1272
  %vm1279 = vmor %vm1277, %vm1278
  %v1280 = vsel %vm1279, %v1272, %v1276
  %v1281 = vand.u32 2147483647, %v1186
  %vm1282 = vcmp.eq.f32.partialorder %v1281, 8.507059e+37
  %v1283 = vand.u32 %v1186, 2147483648
  %v1284 = vor.u32 1.1754944e-38, %v1283
  %v1285 = vsel %vm1282, %v1284, %v1280
  %v1286 = vmul.f32 %v1106, %v1285
  %v1287 = vrcp.pop %v1187
  %v1288 = vmul.f32 %v1187, %v1287
  %v1289 = vsub.f32 1.0, %v1288
  %v1290 = vmul.f32 %v1287, %v1289
  %v1291 = vadd.f32 %v1287, %v1290
  %vm1292 = vweird.f32 %v1187
  %vm1293 = vweird.f32 %v1287
  %vm1294 = vmor %vm1292, %vm1293
  %v1295 = vsel %vm1294, %v1287, %v1291
  %v1296 = vand.u32 2147483647, %v1187
  %vm1297 = vcmp.eq.f32.partialorder %v1296, 8.507059e+37
  %v1298 = vand.u32 %v1187, 2147483648
  %v1299 = vor.u32 1.1754944e-38, %v1298
  %v1300 = vsel %vm1297, %v1299, %v1295
  %v1301 = vmul.f32 %v1107, %v1300
  %v1302 = vrcp.pop %v1188
  %v1303 = vmul.f32 %v1188, %v1302
  %v1304 = vsub.f32 1.0, %v1303
  %v1305 = vmul.f32 %v1302, %v1304
  %v1306 = vadd.f32 %v1302, %v1305
  %vm1307 = vweird.f32 %v1188
  %vm1308 = vweird.f32 %v1302
  %vm1309 = vmor %vm1307, %vm1308
  %v1310 = vsel %vm1309, %v1302, %v1306
  %v1311 = vand.u32 2147483647, %v1188
  %vm1312 = vcmp.eq.f32.partialorder %v1311, 8.507059e+37
  %v1313 = vand.u32 %v1188, 2147483648
  %v1314 = vor.u32 1.1754944e-38, %v1313
  %v1315 = vsel %vm1312, %v1314, %v1310
  %v1316 = vmul.f32 %v1108, %v1315
  %v1317 = vrcp.pop %v1189
  %v1318 = vmul.f32 %v1189, %v1317
  %v1319 = vsub.f32 1.0, %v1318
  %v1320 = vmul.f32 %v1317, %v1319
  %v1321 = vadd.f32 %v1317, %v1320
  %vm1322 = vweird.f32 %v1189
  %vm1323 = vweird.f32 %v1317
  %vm1324 = vmor %vm1322, %vm1323
  %v1325 = vsel %vm1324, %v1317, %v1321
  %v1326 = vand.u32 2147483647, %v1189
  %vm1327 = vcmp.eq.f32.partialorder %v1326, 8.507059e+37
  %v1328 = vand.u32 %v1189, 2147483648
  %v1329 = vor.u32 1.1754944e-38, %v1328
  %v1330 = vsel %vm1327, %v1329, %v1325
  %v1331 = vmul.f32 %v1109, %v1330
  %v1332 = vrcp.pop %v1190
  %v1333 = vmul.f32 %v1190, %v1332
  %v1334 = vsub.f32 1.0, %v1333
  %v1335 = vmul.f32 %v1332, %v1334
  %v1336 = vadd.f32 %v1332, %v1335
  %vm1337 = vweird.f32 %v1190
  %vm1338 = vweird.f32 %v1332
  %vm1339 = vmor %vm1337, %vm1338
  %v1340 = vsel %vm1339, %v1332, %v1336
  %v1341 = vand.u32 2147483647, %v1190
  %vm1342 = vcmp.eq.f32.partialorder %v1341, 8.507059e+37
  %v1343 = vand.u32 %v1190, 2147483648
  %v1344 = vor.u32 1.1754944e-38, %v1343
  %v1345 = vsel %vm1342, %v1344, %v1340
  %v1346 = vmul.f32 %v1110, %v1345
  %v1347 = vrcp.pop %v1191
  %v1348 = vmul.f32 %v1191, %v1347
  %v1349 = vsub.f32 1.0, %v1348
  %v1350 = vmul.f32 %v1347, %v1349
  %v1351 = vadd.f32 %v1347, %v1350
  %vm1352 = vweird.f32 %v1191
  %vm1353 = vweird.f32 %v1347
  %vm1354 = vmor %vm1352, %vm1353
  %v1355 = vsel %vm1354, %v1347, %v1351
  %v1356 = vand.u32 2147483647, %v1191
  %vm1357 = vcmp.eq.f32.partialorder %v1356, 8.507059e+37
  %v1358 = vand.u32 %v1191, 2147483648
  %v1359 = vor.u32 1.1754944e-38, %v1358
  %v1360 = vsel %vm1357, %v1359, %v1355
  %v1361 = vmul.f32 %v1111, %v1360
  %v1362 = vrcp.pop %v1192
  %v1363 = vmul.f32 %v1192, %v1362
  %v1364 = vsub.f32 1.0, %v1363
  %v1365 = vmul.f32 %v1362, %v1364
  %v1366 = vadd.f32 %v1362, %v1365
  %vm1367 = vweird.f32 %v1192
  %vm1368 = vweird.f32 %v1362
  %vm1369 = vmor %vm1367, %vm1368
  %v1370 = vsel %vm1369, %v1362, %v1366
  %v1371 = vand.u32 2147483647, %v1192
  %vm1372 = vcmp.eq.f32.partialorder %v1371, 8.507059e+37
  %v1373 = vand.u32 %v1192, 2147483648
  %v1374 = vor.u32 1.1754944e-38, %v1373
  %v1375 = vsel %vm1372, %v1374, %v1370
  %v1376 = vmul.f32 %v1112, %v1375
  %v1377 = vrcp.pop %v1193
  %v1378 = vmul.f32 %v1193, %v1377
  %v1379 = vsub.f32 1.0, %v1378
  %v1380 = vmul.f32 %v1377, %v1379
  %v1381 = vadd.f32 %v1377, %v1380
  %vm1382 = vweird.f32 %v1193
  %vm1383 = vweird.f32 %v1377
  %vm1384 = vmor %vm1382, %vm1383
  %v1385 = vsel %vm1384, %v1377, %v1381
  %v1386 = vand.u32 2147483647, %v1193
  %vm1387 = vcmp.eq.f32.partialorder %v1386, 8.507059e+37
  %v1388 = vand.u32 %v1193, 2147483648
  %v1389 = vor.u32 1.1754944e-38, %v1388
  %v1390 = vsel %vm1387, %v1389, %v1385
  %v1391 = vmul.f32 %v1113, %v1390
  %v1392 = vrcp.pop %v1194
  %v1393 = vmul.f32 %v1194, %v1392
  %v1394 = vsub.f32 1.0, %v1393
  %v1395 = vmul.f32 %v1392, %v1394
  %v1396 = vadd.f32 %v1392, %v1395
  %vm1397 = vweird.f32 %v1194
  %vm1398 = vweird.f32 %v1392
  %vm1399 = vmor %vm1397, %vm1398
  %v1400 = vsel %vm1399, %v1392, %v1396
  %v1401 = vand.u32 2147483647, %v1194
  %vm1402 = vcmp.eq.f32.partialorder %v1401, 8.507059e+37
  %v1403 = vand.u32 %v1194, 2147483648
  %v1404 = vor.u32 1.1754944e-38, %v1403
  %v1405 = vsel %vm1402, %v1404, %v1400
  %v1406 = vmul.f32 %v1114, %v1405
  %v1407 = vrcp.pop %v1195
  %v1408 = vmul.f32 %v1195, %v1407
  %v1409 = vsub.f32 1.0, %v1408
  %v1410 = vmul.f32 %v1407, %v1409
  %v1411 = vadd.f32 %v1407, %v1410
  %vm1412 = vweird.f32 %v1195
  %vm1413 = vweird.f32 %v1407
  %vm1414 = vmor %vm1412, %vm1413
  %v1415 = vsel %vm1414, %v1407, %v1411
  %v1416 = vand.u32 2147483647, %v1195
  %vm1417 = vcmp.eq.f32.partialorder %v1416, 8.507059e+37
  %v1418 = vand.u32 %v1195, 2147483648
  %v1419 = vor.u32 1.1754944e-38, %v1418
  %v1420 = vsel %vm1417, %v1419, %v1415
  %v1421 = vmul.f32 %v1115, %v1420
  %v1422 = vrcp.pop %v1196
  %v1423 = vmul.f32 %v1196, %v1422
  %v1424 = vsub.f32 1.0, %v1423
  %v1425 = vmul.f32 %v1422, %v1424
  %v1426 = vadd.f32 %v1422, %v1425
  %vm1427 = vweird.f32 %v1196
  %vm1428 = vweird.f32 %v1422
  %vm1429 = vmor %vm1427, %vm1428
  %v1430 = vsel %vm1429, %v1422, %v1426
  %v1431 = vand.u32 2147483647, %v1196
  %vm1432 = vcmp.eq.f32.partialorder %v1431, 8.507059e+37
  %v1433 = vand.u32 %v1196, 2147483648
  %v1434 = vor.u32 1.1754944e-38, %v1433
  %v1435 = vsel %vm1432, %v1434, %v1430
  %v1436 = vmul.f32 %v1116, %v1435
  %v1437 = vld [vmem:[%s4] sm:$0xff]
  %1438 = vmatpush.msra.mxu0 %v1436
  %1439 = vmatpush.msra.mxu0 %v1421
  %1440 = vmatpush.msra.mxu0 %v1406
  %1441 = vmatpush.msra.mxu0 %v1391
  %1442 = vmatpush.msra.mxu0 %v1376
  %1443 = vmatpush.msra.mxu0 %v1361
  %1444 = vmatpush.msra.mxu0 %v1346
  %1445 = vmatpush.msra.mxu0 %v1331
  %1446 = vmatpush.msra.mxu0 %v1316
  %1447 = vmatpush.msra.mxu0 %v1301
  %1448 = vmatpush.msra.mxu0 %v1286
  %1449 = vmatpush.msra.mxu0 %v1271
  %1450 = vmatpush.msra.mxu0 %v1256
  %1451 = vmatpush.msra.mxu0 %v1241
  %1452 = vmatpush.msra.mxu0 %v1226
  %1453 = vmatpush.msra.mxu0 %v1211
  %1454 = vmatmul.f32.gmra.mxu0 %v1437
  %v1455 = vpop.f32.mrf.mxu0
  %v1456 = vadd.f32 0.0, %v1455
  %1457 = vdwg.mxu0
  %v1458 = vsel %vm118, %v1456, 0.0
  %1459 = vadd.xlane.f32.xlu0 %v1458
  %v1460 = vpop.xlane.xlu0 %1459
  %vm1461 = vcmask 7168
  %1462 = vst.msk [vmem:[%s5] sm:$0xff] %vm1461, %v1460
  // Predicated region
  $region22: #{tpu_custom_call.1} parent=0 // pred_check
    _
  $region23: #{tpu_custom_call.1} parent=0 // pred_check_branch
    %1464 = sbr.rel (0) target = $region25
  $region24: #{tpu_custom_call.1} parent=0 // pred_region
    _
  $region25: #{tpu_custom_call.1} parent=0 // pred_fallthru
    _
  // Predicated region
  $region26: #{tpu_custom_call.1} parent=0 // pred_check
    _
  $region27: #{tpu_custom_call.1} parent=0 // pred_check_branch
    %1466 = sbr.rel (0) target = $region29
  $region28: #{tpu_custom_call.1} parent=0 // pred_region
    _
  $region29: #{tpu_custom_call.1} parent=0 // pred_fallthru
    _

</llo_original>
